<compile_context>
chip_gen: v7x
topology: tpu7x:2x2x1
jax: 0.10.0
libtpu: 0.0.40
codegen_flags: <defaults>
</compile_context>

<pallas_src>
import functools
import math

import jax
import jax.numpy as jnp
from jax.experimental import pallas as pl
from jax.experimental.pallas import tpu as pltpu

_SCORE_LANES = 128  # lane-dense padded width for the class-score output


# ----------------------------------------------------------------------------------
# Fused Pallas kernel: backbone patch-embed -> decoder -> heads -> score softmax
# ----------------------------------------------------------------------------------
def _fused_kernel(patches_ref, w_ref, c_ref, masks_ref, scores_ref, *,
                  T, N, D, md, ffn, K1, pdim, Q, cols):
    f32 = jnp.float32
    bf16 = jnp.bfloat16
    c_patch, c_feat, c_o, c_ff1, c_ff2, c_heads = cols

    x = patches_ref[0]                                                    # [T*N, pdim] bf16

    # --- synthetic backbone: stride-p patch embedding (pixel normalization folded in) ---
    feat = jnp.dot(x, w_ref[0:pdim, c_patch:c_patch + D],
                   preferred_element_type=f32)
    feat = jnp.maximum(feat + c_ref[Q:Q + 1, c_patch:c_patch + D], 0.0)   # [T*N, D] f32

    # --- fused pixel-decoder mask features + k/v projections (one MXU call) ---
    fa = jnp.dot(feat.astype(bf16), w_ref[0:D, c_feat:c_feat + md + 2 * D],
                 preferred_element_type=f32)
    fa = fa + c_ref[Q:Q + 1, c_feat:c_feat + md + 2 * D]                  # [T*N, md+2D]
    mask_features = fa[:, 0:md]                                           # [T*N, md] f32
    k = fa[:, md:md + D].astype(bf16)                                     # [T*N, D]
    v = fa[:, md + D:md + 2 * D].astype(bf16)                             # [T*N, D]

    # --- per-frame cross-attention: ONE score matmul over the full T*N axis ---
    q = c_ref[0:Q, 0:D].astype(bf16)                                      # precomputed q-proj
    s = jax.lax.dot_general(q, k, (((1,), (1,)), ((), ())),
                            preferred_element_type=f32)                   # [Q, T*N]
    # segmented (per-frame) softmax on static column slices, concatenated back lane-dense
    parts = []
    for t in range(T):                                                    # T=2, static
        st = s[:, t * N:(t + 1) * N]
        m = jnp.max(st, axis=-1, keepdims=True)
        e = jnp.exp(st - m)
        inv = pl.reciprocal(jnp.sum(e, axis=-1, keepdims=True), approx=True)
        parts.append(e * inv)
    p = jnp.concatenate(parts, axis=-1)                                   # [Q, T*N]
    attn = jnp.dot(p.astype(bf16), v, preferred_element_type=f32)         # sum_t p_t @ v_t

    # output projection (1/T frame-mean folded into w_o) + residual (query_embed + b_o folded)
    q_video = jnp.dot(attn.astype(bf16), w_ref[0:D, c_o:c_o + D],
                      preferred_element_type=f32) + c_ref[0:Q, D:2 * D]   # [Q, D]

    # --- IFC video-level FFN (residual) ---
    h = jnp.dot(q_video.astype(bf16), w_ref[0:D, c_ff1:c_ff1 + ffn],
                preferred_element_type=f32) + c_ref[Q:Q + 1, c_ff1:c_ff1 + ffn]
    h = jnp.maximum(h, 0.0)
    q_video = q_video + jnp.dot(h.astype(bf16), w_ref[0:ffn, c_ff2:c_ff2 + D],
                                preferred_element_type=f32) + c_ref[Q:Q + 1, c_ff2:c_ff2 + D]

    # --- fused heads: [mask_embed | class_logits] in one matmul ---
    heads = jnp.dot(q_video.astype(bf16), w_ref[0:D, c_heads:c_heads + md + K1],
                    preferred_element_type=f32) + c_ref[Q:Q + 1, c_heads:c_heads + md + K1]
    mask_embed = heads[:, 0:md]                                           # [Q, md]
    logits = heads[:, md:md + K1]                                         # [Q, K+1]

    # class-score softmax — EXACT reciprocal (top-k ordering must not be perturbed),
    # padded to a lane-dense [Q, 128] store.
    lm = jnp.max(logits, axis=-1, keepdims=True)
    le = jnp.exp(logits - lm)
    probs = le / jnp.sum(le, axis=-1, keepdims=True)
    scores_ref[0] = jnp.concatenate(
        [probs, jnp.zeros((Q, _SCORE_LANES - K1), f32)], axis=-1)

    # mask prediction: contract md of both operands -> lane-dense [Q, T*N] output
    masks_ref[0] = jax.lax.dot_general(
        mask_embed.astype(bf16), mask_features.astype(bf16),
        (((1,), (1,)), ((), ())), preferred_element_type=f32)


# ----------------------------------------------------------------------------------
# Synthetic VideoMaskFormer (inference forward)
# ----------------------------------------------------------------------------------
class VideoMaskFormerPallas:
    def __init__(self, key, *, num_frames=2, in_chans=3, img_size=32, patch=4,
                 hidden_dim=32, dim_ffn=64, mask_dim=32, num_queries=8, num_classes=4):
        self.T = num_frames
        self.C = in_chans
        self.H = self.W = img_size
        self.patch = patch
        self.Hp = img_size // patch
        self.Wp = img_size // patch
        self.N = self.Hp * self.Wp
        self.D = hidden_dim
        self.dim_ffn = dim_ffn
        self.mask_dim = mask_dim
        self.Q = num_queries
        self.num_classes = num_classes

        D, md, ffn, Q = hidden_dim, mask_dim, dim_ffn, num_queries
        K1 = num_classes + 1
        pdim = in_chans * patch * patch
        self.pdim = pdim

        # registered buffers (pixel_mean / pixel_std) of the torch module.
        pixel_mean = jnp.array([123.675, 116.28, 103.53], jnp.float32)
        pixel_std = jnp.array([58.395, 57.12, 57.375], jnp.float32)

        ks = jax.random.split(key, 12)

        def init(k, shape, scale):
            return jax.random.normal(k, shape, jnp.float32) * scale

        # synthetic backbone: stride-p patch embedding (stands in for ResNet/Swin + pixel decoder)
        w_patch = init(ks[0], (pdim, D), 1.0 / math.sqrt(pdim))
        b_patch = jnp.zeros((D,), jnp.float32)
        # fold per-channel pixel normalization (x - mean)/std into the linear patch embed:
        #   relu(((x - m)/s) @ W + b) == relu(x @ (W/s) + (b - (m/s) @ W))
        inv_std = jnp.repeat(1.0 / pixel_std, patch * patch)              # [pdim], (c,i,j) layout
        mean_r = jnp.repeat(pixel_mean, patch * patch)                    # [pdim]
        w_patch_f = w_patch * inv_std[:, None]
        b_patch_f = b_patch - (mean_r * inv_std) @ w_patch

        # pixel-decoder mask features + per-frame decoder k/v, concatenated into one weight
        w_maskf = init(ks[1], (D, md), 1.0 / math.sqrt(D))
        b_maskf = jnp.zeros((md,), jnp.float32)
        w_k = init(ks[4], (D, D), 1.0 / math.sqrt(D))
        w_v = init(ks[5], (D, D), 1.0 / math.sqrt(D))
        w_featproj = jnp.concatenate([w_maskf, w_k, w_v], axis=1)         # [D, md + 2D]
        b_featproj = jnp.concatenate([b_maskf, jnp.zeros((2 * D,), jnp.float32)])

        # learned object queries; q-projection (with 1/sqrt(D) attention scale) PRECOMPUTED
        query_embed = init(ks[2], (Q, D), 0.02)
        w_q = init(ks[3], (D, D), 1.0 / math.sqrt(D)) * (1.0 / math.sqrt(D))
        q_proj = query_embed @ w_q                                        # [Q, D] constant
        # attention output projection: fold the 1/T frame mean; fold b_o into the residual
        w_o = init(ks[6], (D, D), 1.0 / math.sqrt(D)) * (1.0 / num_frames)
        b_o = jnp.zeros((D,), jnp.float32)
        resid = query_embed + b_o                                         # [Q, D] constant

        # IFC video-level FFN
        w_ffn1 = init(ks[7], (D, ffn), 1.0 / math.sqrt(D))
        b_ffn1 = jnp.zeros((ffn,), jnp.float32)
        w_ffn2 = init(ks[8], (ffn, D), 1.0 / math.sqrt(ffn))
        b_ffn2 = jnp.zeros((D,), jnp.float32)

        # heads, concatenated: [mask_embed | class_logits]
        w_cls = init(ks[9], (D, K1), 1.0 / math.sqrt(D))
        b_cls = jnp.zeros((K1,), jnp.float32)
        w_mask = init(ks[10], (D, md), 1.0 / math.sqrt(D))
        b_mask = jnp.zeros((md,), jnp.float32)
        w_heads = jnp.concatenate([w_mask, w_cls], axis=1)                # [D, md + K1]
        b_heads = jnp.concatenate([b_mask, b_cls])

        # ---- pack everything into two lane-dense slabs (3 input DMAs total) ----
        c_patch = 0
        c_feat = c_patch + D
        c_o = c_feat + md + 2 * D
        c_ff1 = c_o + D
        c_ff2 = c_ff1 + ffn
        c_heads = c_ff2 + D
        c_end = c_heads + md + K1
        ctot = ((c_end + 127) // 128) * 128                               # lane-dense width
        rows = ((max(pdim, D, ffn) + 7) // 8) * 8                         # max fan-in, 8-aligned
        # TODO(synk): at real D/mask_dim, pad each column block to a 128-lane boundary so the
        # k/v slices feeding the MXU are lane-aligned (harmless at D=32).

        w_slab = jnp.zeros((rows, ctot), jnp.float32)
        w_slab = w_slab.at[:pdim, c_patch:c_patch + D].set(w_patch_f)
        w_slab = w_slab.at[:D, c_feat:c_feat + md + 2 * D].set(w_featproj)
        w_slab = w_slab.at[:D, c_o:c_o + D].set(w_o)
        w_slab = w_slab.at[:D, c_ff1:c_ff1 + ffn].set(w_ffn1)
        w_slab = w_slab.at[:ffn, c_ff2:c_ff2 + D].set(w_ffn2)
        w_slab = w_slab.at[:D, c_heads:c_heads + md + K1].set(w_heads)
        self.w_slab = w_slab.astype(jnp.bfloat16)                         # bf16 MXU operands

        crows = ((Q + 1 + 7) // 8) * 8
        c_slab = jnp.zeros((crows, ctot), jnp.float32)
        c_slab = c_slab.at[:Q, 0:D].set(q_proj)                           # precomputed q
        c_slab = c_slab.at[:Q, D:2 * D].set(resid)                        # query_embed + b_o
        c_slab = c_slab.at[Q, c_patch:c_patch + D].set(b_patch_f)         # bias row shares the
        c_slab = c_slab.at[Q, c_feat:c_feat + md + 2 * D].set(b_featproj)  # weight-slab columns
        c_slab = c_slab.at[Q, c_ff1:c_ff1 + ffn].set(b_ffn1)
        c_slab = c_slab.at[Q, c_ff2:c_ff2 + D].set(b_ffn2)
        c_slab = c_slab.at[Q, c_heads:c_heads + md + K1].set(b_heads)
        self.c_slab = c_slab                                              # f32 constants

        self.cols = (c_patch, c_feat, c_o, c_ff1, c_ff2, c_heads)
        self.w_rows, self.ctot, self.crows = rows, ctot, crows
        self._fused = self._build_fused(num_clips=1)

    # ------------- build the single fused pallas_call -------------
    def _build_fused(self, num_clips=1):
        T, N, D, Q = self.T, self.N, self.D, self.Q
        md, ffn, K1 = self.mask_dim, self.dim_ffn, self.num_classes + 1
        pdim, B = self.pdim, num_clips

        kernel = functools.partial(_fused_kernel, T=T, N=N, D=D, md=md, ffn=ffn,
                                   K1=K1, pdim=pdim, Q=Q, cols=self.cols)

        # TODO(synk): at real (non-toy) scales, tile the T*Hp*Wp axis with additional grid
        # dims and set vmem_limit_bytes; tile sizes must be re-derived for v7x's 64 MiB VMEM
        # (vs 128 MiB on v5e/v6e), remembering BlockSpec double-buffers each input.
        return pl.pallas_call(
            kernel,
            out_shape=(jax.ShapeDtypeStruct((B, Q, T * N), jnp.float32),
                       jax.ShapeDtypeStruct((B, Q, _SCORE_LANES), jnp.float32)),
            grid=(B,),
            in_specs=[
                pl.BlockSpec((1, T * N, pdim), lambda b: (b, 0, 0)),            # patches
                pl.BlockSpec((self.w_rows, self.ctot), lambda b: (0, 0)),       # weight slab
                pl.BlockSpec((self.crows, self.ctot), lambda b: (0, 0)),        # constants slab
            ],
            out_specs=(pl.BlockSpec((1, Q, T * N), lambda b: (b, 0, 0)),
                       pl.BlockSpec((1, Q, _SCORE_LANES), lambda b: (b, 0, 0))),
            compiler_params=pltpu.CompilerParams(
                dimension_semantics=("parallel",)),   # clips shard across v7x's 2 TCs
        )

    # ---------------- forward (eval branch of the torch module) ----------------
    def forward(self, images_tchw, output_height=None, output_width=None):
        T, C, H, W = images_tchw.shape
        assert (T, C, H, W) == (self.T, self.C, self.H, self.W)
        output_height = output_height or H
        output_width = output_width or W
        p, Hp, Wp = self.patch, self.Hp, self.Wp

        # Patch extraction (tiny copy). Pixel normalization is folded into the weight slab.
        # TODO(synk): at larger image sizes this gather should move into a BlockSpec
        # index_map / manual DMA instead of an XLA transpose.
        patches = images_tchw.reshape(T, C, Hp, p, Wp, p)
        patches = jnp.transpose(patches, (0, 2, 4, 1, 3, 5)).reshape(T * Hp * Wp, C * p * p)
        patches = patches[None].astype(jnp.bfloat16)                       # [1 clip, T*N, pdim]

        # One fused Pallas kernel for backbone embed + decoder + heads + score softmax.
        masks_flat, scores_pad = self._fused(patches, self.w_slab, self.c_slab)

        mask_logits_lowres = masks_flat[0].reshape(self.Q, T, Hp, Wp)
        scores_full = scores_pad[0, :, : self.num_classes + 1]             # [Q, K+1]

        return self.inference_video(
            scores_full, mask_logits_lowres, (H, W), output_height, output_width)

    # ---------------- inference_video ----------------
    def inference_video(self, scores_full, mask_logits_lowres, img_size,
                        output_height, output_width):
        K = self.num_classes
        scores = scores_full[:, :-1]                          # drop "no-object" column  [Q, K]
        scores_per_image, topk_indices = jax.lax.top_k(scores.reshape(-1), 10)
        labels_per_image = (topk_indices % K).astype(jnp.int32)
        query_indices = topk_indices // K

        # Select the top-10 queries FIRST (selection depends only on scores), then ONE
        # bilinear resize of just those 10 masks straight to the output size.
        sel_masks = mask_logits_lowres[query_indices]          # [10, T, Hp, Wp]
        # TODO(synk): jax.image.resize bilinear differs marginally from torch
        # F.interpolate(align_corners=False) edge handling; the torch reference also
        # resamples twice ((Hp,Wp)->(H,W)->crop->(out)) — here we resample once.
        sel_masks = jax.image.resize(
            sel_masks, (10, self.T, output_height, output_width), method="bilinear")
        masks = sel_masks > 0.0
        return {
            "image_size": (output_height, output_width),
            "pred_scores": scores_per_image,
            "pred_labels": labels_per_image,
            "pred_masks": masks,
        }


# ----------------------------------------------------------------------------------
if __name__ == "__main__":
    key = jax.random.PRNGKey(0)
    k_model, k_img = jax.random.split(key)

    model = VideoMaskFormerPallas(k_model, num_frames=2, in_chans=3, img_size=32,
                                  patch=4, hidden_dim=32, dim_ffn=64, mask_dim=32,
                                  num_queries=8, num_classes=4)

    # one video clip of 2 frames, NCHW per frame, uint8-like pixel range
    images = jax.random.uniform(k_img, (2, 3, 32, 32), jnp.float32, 0.0, 255.0)

    out = model.forward(images, output_height=32, output_width=32)
    jax.block_until_ready(out["pred_masks"])
    jax.block_until_ready(out["pred_scores"])
    jax.block_until_ready(out["pred_labels"])

    assert out["pred_masks"].shape == (10, 2, 32, 32)
    assert out["pred_scores"].shape == (10,)
    assert out["pred_labels"].shape == (10,)
    assert bool(jnp.all(jnp.isfinite(out["pred_scores"])))
    print("KERNEL_OK")
</pallas_src>

<mosaic_0001>
module attributes {stable_mosaic.version = 11 : i64} {
  func.func @_fused_kernel(%arg0: i32, %arg1: memref<1x128x48xbf16, #tpu.memory_space<vmem>>, %arg2: memref<64x384xbf16, #tpu.memory_space<vmem>>, %arg3: memref<16x384xf32, #tpu.memory_space<vmem>>, %arg4: memref<1x8x128xf32, #tpu.memory_space<vmem>>, %arg5: memref<1x8x128xf32, #tpu.memory_space<vmem>>) attributes {dimension_semantics = [#tpu.dimension_semantics<parallel>], iteration_bounds = array<i64: 1>, scalar_prefetch = 0 : i64, scratch_operands = 0 : i64, tpu.core_type = #tpu.core_type<tc>, window_params = [{transform_indices = @transform_0, window_bounds = array<i64: 1, 128, 48>}, {pipeline_mode = #tpu.pipeline_mode<synchronous>, transform_indices = @transform_1, window_bounds = array<i64: 64, 384>}, {pipeline_mode = #tpu.pipeline_mode<synchronous>, transform_indices = @transform_2, window_bounds = array<i64: 16, 384>}, {transform_indices = @transform_3, window_bounds = array<i64: 1, 8, 128>}, {transform_indices = @transform_4, window_bounds = array<i64: 1, 8, 128>}]} {
    %c0 = arith.constant 0 : index
    %c0_0 = arith.constant 0 : index
    %c0_1 = arith.constant 0 : index
    %0 = vector.load %arg1[%c0, %c0_0, %c0_1] : memref<1x128x48xbf16, #tpu.memory_space<vmem>>, vector<1x128x48xbf16>
    %1 = vector.shape_cast %0 : vector<1x128x48xbf16> to vector<128x48xbf16>
    %c0_2 = arith.constant 0 : index
    %c0_3 = arith.constant 0 : index
    %2 = vector.load %arg2[%c0_2, %c0_3] : memref<64x384xbf16, #tpu.memory_space<vmem>>, vector<48x32xbf16>
    %cst = arith.constant dense<0.000000e+00> : vector<128x32xf32>
    %3 = tpu.matmul %1, %2, %cst {dimension_numbers = #tpu.dot_dimension_numbers<[1], [0], [0], [1], [0, 0, 1, 1], [], []>} : vector<128x48xbf16>, vector<48x32xbf16>, vector<128x32xf32> -> vector<128x32xf32>
    %c8 = arith.constant 8 : index
    %c0_4 = arith.constant 0 : index
    %4 = vector.load %arg3[%c8, %c0_4] : memref<16x384xf32, #tpu.memory_space<vmem>>, vector<1x32xf32>
    %5 = vector.broadcast %4 : vector<1x32xf32> to vector<128x32xf32>
    %6 = arith.addf %3, %5 : vector<128x32xf32>
    %cst_5 = arith.constant 0.000000e+00 : f32
    %7 = vector.broadcast %cst_5 : f32 to vector<128x32xf32>
    %8 = arith.maximumf %6, %7 : vector<128x32xf32>
    %9 = arith.truncf %8 : vector<128x32xf32> to vector<128x32xbf16>
    %c0_6 = arith.constant 0 : index
    %c32 = arith.constant 32 : index
    %10 = vector.load %arg2[%c0_6, %c32] : memref<64x384xbf16, #tpu.memory_space<vmem>>, vector<32x96xbf16>
    %cst_7 = arith.constant dense<0.000000e+00> : vector<128x96xf32>
    %11 = tpu.matmul %9, %10, %cst_7 {dimension_numbers = #tpu.dot_dimension_numbers<[1], [0], [0], [1], [0, 0, 1, 1], [], []>} : vector<128x32xbf16>, vector<32x96xbf16>, vector<128x96xf32> -> vector<128x96xf32>
    %c8_8 = arith.constant 8 : index
    %c32_9 = arith.constant 32 : index
    %12 = vector.load %arg3[%c8_8, %c32_9] : memref<16x384xf32, #tpu.memory_space<vmem>>, vector<1x96xf32>
    %13 = vector.broadcast %12 : vector<1x96xf32> to vector<128x96xf32>
    %14 = arith.addf %11, %13 : vector<128x96xf32>
    %15 = vector.extract_strided_slice %14 {offsets = [0, 0], sizes = [128, 32], strides = [1, 1]} : vector<128x96xf32> to vector<128x32xf32>
    %16 = vector.extract_strided_slice %14 {offsets = [0, 32], sizes = [128, 32], strides = [1, 1]} : vector<128x96xf32> to vector<128x32xf32>
    %17 = arith.truncf %16 : vector<128x32xf32> to vector<128x32xbf16>
    %18 = vector.extract_strided_slice %14 {offsets = [0, 64], sizes = [128, 32], strides = [1, 1]} : vector<128x96xf32> to vector<128x32xf32>
    %19 = arith.truncf %18 : vector<128x32xf32> to vector<128x32xbf16>
    %c0_10 = arith.constant 0 : index
    %c0_11 = arith.constant 0 : index
    %20 = vector.load %arg3[%c0_10, %c0_11] : memref<16x384xf32, #tpu.memory_space<vmem>>, vector<8x32xf32>
    %21 = arith.truncf %20 : vector<8x32xf32> to vector<8x32xbf16>
    %cst_12 = arith.constant dense<0.000000e+00> : vector<8x128xf32>
    %22 = tpu.matmul %21, %17, %cst_12 {dimension_numbers = #tpu.dot_dimension_numbers<[1], [1], [0], [0], [0, 0, 1, 0], [], []>} : vector<8x32xbf16>, vector<128x32xbf16>, vector<8x128xf32> -> vector<8x128xf32>
    %23 = vector.extract_strided_slice %22 {offsets = [0, 0], sizes = [8, 64], strides = [1, 1]} : vector<8x128xf32> to vector<8x64xf32>
    %cst_13 = arith.constant dense<0xFF800000> : vector<8xf32>
    %24 = vector.multi_reduction <maximumf>, %23, %cst_13 [1] : vector<8x64xf32> to vector<8xf32>
    %25 = vector.shape_cast %24 : vector<8xf32> to vector<8x1xf32>
    %26 = vector.broadcast %25 : vector<8x1xf32> to vector<8x64xf32>
    %27 = arith.subf %23, %26 : vector<8x64xf32>
    %28 = math.exp %27 : vector<8x64xf32>
    %cst_14 = arith.constant dense<0.000000e+00> : vector<8xf32>
    %29 = vector.multi_reduction <add>, %28, %cst_14 [1] : vector<8x64xf32> to vector<8xf32>
    %30 = vector.shape_cast %29 : vector<8xf32> to vector<8x1xf32>
    %31 = tpu.reciprocal %30 {approx = true} : vector<8x1xf32> -> vector<8x1xf32>
    %32 = vector.broadcast %31 : vector<8x1xf32> to vector<8x64xf32>
    %33 = arith.mulf %28, %32 : vector<8x64xf32>
    %34 = vector.extract_strided_slice %22 {offsets = [0, 64], sizes = [8, 64], strides = [1, 1]} : vector<8x128xf32> to vector<8x64xf32>
    %cst_15 = arith.constant dense<0xFF800000> : vector<8xf32>
    %35 = vector.multi_reduction <maximumf>, %34, %cst_15 [1] : vector<8x64xf32> to vector<8xf32>
    %36 = vector.shape_cast %35 : vector<8xf32> to vector<8x1xf32>
    %37 = vector.broadcast %36 : vector<8x1xf32> to vector<8x64xf32>
    %38 = arith.subf %34, %37 : vector<8x64xf32>
    %39 = math.exp %38 : vector<8x64xf32>
    %cst_16 = arith.constant dense<0.000000e+00> : vector<8xf32>
    %40 = vector.multi_reduction <add>, %39, %cst_16 [1] : vector<8x64xf32> to vector<8xf32>
    %41 = vector.shape_cast %40 : vector<8xf32> to vector<8x1xf32>
    %42 = tpu.reciprocal %41 {approx = true} : vector<8x1xf32> -> vector<8x1xf32>
    %43 = vector.broadcast %42 : vector<8x1xf32> to vector<8x64xf32>
    %44 = arith.mulf %39, %43 : vector<8x64xf32>
    %45 = tpu.concatenate %33, %44 in 1 : vector<8x64xf32>, vector<8x64xf32> -> vector<8x128xf32>
    %46 = arith.truncf %45 : vector<8x128xf32> to vector<8x128xbf16>
    %cst_17 = arith.constant dense<0.000000e+00> : vector<8x32xf32>
    %47 = tpu.matmul %46, %19, %cst_17 {dimension_numbers = #tpu.dot_dimension_numbers<[1], [0], [0], [1], [0, 0, 1, 1], [], []>} : vector<8x128xbf16>, vector<128x32xbf16>, vector<8x32xf32> -> vector<8x32xf32>
    %48 = arith.truncf %47 : vector<8x32xf32> to vector<8x32xbf16>
    %c0_18 = arith.constant 0 : index
    %c128 = arith.constant 128 : index
    %49 = vector.load %arg2[%c0_18, %c128] : memref<64x384xbf16, #tpu.memory_space<vmem>>, vector<32x32xbf16>
    %cst_19 = arith.constant dense<0.000000e+00> : vector<8x32xf32>
    %50 = tpu.matmul %48, %49, %cst_19 {dimension_numbers = #tpu.dot_dimension_numbers<[1], [0], [0], [1], [0, 0, 1, 1], [], []>} : vector<8x32xbf16>, vector<32x32xbf16>, vector<8x32xf32> -> vector<8x32xf32>
    %c0_20 = arith.constant 0 : index
    %c32_21 = arith.constant 32 : index
    %51 = vector.load %arg3[%c0_20, %c32_21] : memref<16x384xf32, #tpu.memory_space<vmem>>, vector<8x32xf32>
    %52 = arith.addf %50, %51 : vector<8x32xf32>
    %53 = arith.truncf %52 : vector<8x32xf32> to vector<8x32xbf16>
    %c0_22 = arith.constant 0 : index
    %c160 = arith.constant 160 : index
    %54 = vector.load %arg2[%c0_22, %c160] : memref<64x384xbf16, #tpu.memory_space<vmem>>, vector<32x64xbf16>
    %cst_23 = arith.constant dense<0.000000e+00> : vector<8x64xf32>
    %55 = tpu.matmul %53, %54, %cst_23 {dimension_numbers = #tpu.dot_dimension_numbers<[1], [0], [0], [1], [0, 0, 1, 1], [], []>} : vector<8x32xbf16>, vector<32x64xbf16>, vector<8x64xf32> -> vector<8x64xf32>
    %c8_24 = arith.constant 8 : index
    %c160_25 = arith.constant 160 : index
    %56 = vector.load %arg3[%c8_24, %c160_25] : memref<16x384xf32, #tpu.memory_space<vmem>>, vector<1x64xf32>
    %57 = vector.broadcast %56 : vector<1x64xf32> to vector<8x64xf32>
    %58 = arith.addf %55, %57 : vector<8x64xf32>
    %cst_26 = arith.constant 0.000000e+00 : f32
    %59 = vector.broadcast %cst_26 : f32 to vector<8x64xf32>
    %60 = arith.maximumf %58, %59 : vector<8x64xf32>
    %61 = arith.truncf %60 : vector<8x64xf32> to vector<8x64xbf16>
    %c0_27 = arith.constant 0 : index
    %c224 = arith.constant 224 : index
    %62 = vector.load %arg2[%c0_27, %c224] : memref<64x384xbf16, #tpu.memory_space<vmem>>, vector<64x32xbf16>
    %cst_28 = arith.constant dense<0.000000e+00> : vector<8x32xf32>
    %63 = tpu.matmul %61, %62, %cst_28 {dimension_numbers = #tpu.dot_dimension_numbers<[1], [0], [0], [1], [0, 0, 1, 1], [], []>} : vector<8x64xbf16>, vector<64x32xbf16>, vector<8x32xf32> -> vector<8x32xf32>
    %64 = arith.addf %52, %63 : vector<8x32xf32>
    %c8_29 = arith.constant 8 : index
    %c224_30 = arith.constant 224 : index
    %65 = vector.load %arg3[%c8_29, %c224_30] : memref<16x384xf32, #tpu.memory_space<vmem>>, vector<1x32xf32>
    %66 = vector.broadcast %65 : vector<1x32xf32> to vector<8x32xf32>
    %67 = arith.addf %64, %66 : vector<8x32xf32>
    %68 = arith.truncf %67 : vector<8x32xf32> to vector<8x32xbf16>
    %c0_31 = arith.constant 0 : index
    %c256 = arith.constant 256 : index
    %69 = vector.load %arg2[%c0_31, %c256] : memref<64x384xbf16, #tpu.memory_space<vmem>>, vector<32x37xbf16>
    %cst_32 = arith.constant dense<0.000000e+00> : vector<8x37xf32>
    %70 = tpu.matmul %68, %69, %cst_32 {dimension_numbers = #tpu.dot_dimension_numbers<[1], [0], [0], [1], [0, 0, 1, 1], [], []>} : vector<8x32xbf16>, vector<32x37xbf16>, vector<8x37xf32> -> vector<8x37xf32>
    %c8_33 = arith.constant 8 : index
    %c256_34 = arith.constant 256 : index
    %71 = vector.load %arg3[%c8_33, %c256_34] : memref<16x384xf32, #tpu.memory_space<vmem>>, vector<1x37xf32>
    %72 = vector.broadcast %71 : vector<1x37xf32> to vector<8x37xf32>
    %73 = arith.addf %70, %72 : vector<8x37xf32>
    %74 = vector.extract_strided_slice %73 {offsets = [0, 0], sizes = [8, 32], strides = [1, 1]} : vector<8x37xf32> to vector<8x32xf32>
    %75 = vector.extract_strided_slice %73 {offsets = [0, 32], sizes = [8, 5], strides = [1, 1]} : vector<8x37xf32> to vector<8x5xf32>
    %cst_35 = arith.constant dense<0xFF800000> : vector<8xf32>
    %76 = vector.multi_reduction <maximumf>, %75, %cst_35 [1] : vector<8x5xf32> to vector<8xf32>
    %77 = vector.shape_cast %76 : vector<8xf32> to vector<8x1xf32>
    %78 = vector.broadcast %77 : vector<8x1xf32> to vector<8x5xf32>
    %79 = arith.subf %75, %78 : vector<8x5xf32>
    %80 = math.exp %79 : vector<8x5xf32>
    %cst_36 = arith.constant dense<0.000000e+00> : vector<8xf32>
    %81 = vector.multi_reduction <add>, %80, %cst_36 [1] : vector<8x5xf32> to vector<8xf32>
    %82 = vector.shape_cast %81 : vector<8xf32> to vector<8x1xf32>
    %83 = vector.broadcast %82 : vector<8x1xf32> to vector<8x5xf32>
    %84 = arith.divf %80, %83 : vector<8x5xf32>
    %cst_37 = arith.constant 0.000000e+00 : f32
    %85 = vector.broadcast %cst_37 : f32 to vector<8x123xf32>
    %86 = tpu.concatenate %84, %85 in 1 : vector<8x5xf32>, vector<8x123xf32> -> vector<8x128xf32>
    %c0_38 = arith.constant 0 : index
    %c0_39 = arith.constant 0 : index
    %c0_40 = arith.constant 0 : index
    %87 = vector.load %arg5[%c0_38, %c0_39, %c0_40] : memref<1x8x128xf32, #tpu.memory_space<vmem>>, vector<1x8x128xf32>
    %88 = vector.shape_cast %87 : vector<1x8x128xf32> to vector<8x128xf32>
    %89 = vector.shape_cast %86 : vector<8x128xf32> to vector<1x8x128xf32>
    tpu.vector_store %arg5[%c0_38, %c0_39, %c0_40], %89 {strides = array<i32>} : memref<1x8x128xf32, #tpu.memory_space<vmem>>, vector<1x8x128xf32>,
    %90 = arith.truncf %74 : vector<8x32xf32> to vector<8x32xbf16>
    %91 = arith.truncf %15 : vector<128x32xf32> to vector<128x32xbf16>
    %cst_41 = arith.constant dense<0.000000e+00> : vector<8x128xf32>
    %92 = tpu.matmul %90, %91, %cst_41 {dimension_numbers = #tpu.dot_dimension_numbers<[1], [1], [0], [0], [0, 0, 1, 0], [], []>} : vector<8x32xbf16>, vector<128x32xbf16>, vector<8x128xf32> -> vector<8x128xf32>
    %c0_42 = arith.constant 0 : index
    %c0_43 = arith.constant 0 : index
    %c0_44 = arith.constant 0 : index
    %93 = vector.load %arg4[%c0_42, %c0_43, %c0_44] : memref<1x8x128xf32, #tpu.memory_space<vmem>>, vector<1x8x128xf32>
    %94 = vector.shape_cast %93 : vector<1x8x128xf32> to vector<8x128xf32>
    %95 = vector.shape_cast %92 : vector<8x128xf32> to vector<1x8x128xf32>
    tpu.vector_store %arg4[%c0_42, %c0_43, %c0_44], %95 {strides = array<i32>} : memref<1x8x128xf32, #tpu.memory_space<vmem>>, vector<1x8x128xf32>,
    return
  }
  func.func @transform_0(%arg0: i32) -> (i32, i32, i32) {
    %c0_i32 = arith.constant 0 : i32
    %c0_i32_0 = arith.constant 0 : i32
    %c0_i32_1 = arith.constant 0 : i32
    return %arg0, %c0_i32, %c0_i32_0 : i32, i32, i32
  }
  func.func @transform_1(%arg0: i32) -> (i32, i32) {
    %c0_i32 = arith.constant 0 : i32
    %c0_i32_0 = arith.constant 0 : i32
    %c0_i32_1 = arith.constant 0 : i32
    return %c0_i32, %c0_i32_0 : i32, i32
  }
  func.func @transform_2(%arg0: i32) -> (i32, i32) {
    %c0_i32 = arith.constant 0 : i32
    %c0_i32_0 = arith.constant 0 : i32
    %c0_i32_1 = arith.constant 0 : i32
    return %c0_i32, %c0_i32_0 : i32, i32
  }
  func.func @transform_3(%arg0: i32) -> (i32, i32, i32) {
    %c0_i32 = arith.constant 0 : i32
    %c0_i32_0 = arith.constant 0 : i32
    %c0_i32_1 = arith.constant 0 : i32
    return %arg0, %c0_i32, %c0_i32_0 : i32, i32, i32
  }
  func.func @transform_4(%arg0: i32) -> (i32, i32, i32) {
    %c0_i32 = arith.constant 0 : i32
    %c0_i32_0 = arith.constant 0 : i32
    %c0_i32_1 = arith.constant 0 : i32
    return %arg0, %c0_i32, %c0_i32_0 : i32, i32, i32
  }
}

</mosaic_0001>

<llo_original>
// kernel: tpu_custom_call.1
$region0: #{tpu_custom_call.1}
  #allocation0 [shape = 'u32[]', space=smem, size = 0x4, offset = 0x4, fixed_abs, tag = 'smem constant byte address 0x4 - core index']
  #allocation1 [shape = 'u32[144,128]{1,0:T(1,128)}', space=vmem, size = 0x12000, scoped, tag = 'internal scratch']
  %s0 = inlined_call_operand.vmem [shape: bf16[1,128,48], index: 0, kind: input, shape index: {}]
  %s1 = inlined_call_operand.hbm [shape: bf16[64,384], index: 1, kind: input, shape index: {}]
  %s2 = inlined_call_operand.vmem [shape: f32[16,384], index: 2, kind: input, shape index: {}]
  %s3 = inlined_call_operand.hbm [shape: f32[1,8,128], index: 3, kind: output, shape index: {0}]
  %s4 = inlined_call_operand.hbm [shape: f32[1,8,128], index: 4, kind: output, shape index: {1}]
  %5 = xla_tuple %s3, %s4
  %s6 = sld [smem:[#allocation0]]
  $region34: #{tpu_custom_call.1} parent=0
    _
  %s8 = ssub.s32 1, %s6
  %s9 = scalar_select 0, %s8, %s6
  $region1: #{tpu_custom_call.1} parent=0
    #allocation2 [shape = 'u8[49152]{0}', space=vmem, size = 0xc000, scoped, tag = 'input window, operand 1, single buffered']
    #allocation3 [shape = 's32[1]{0}', space=sflag, size = 0x4, scoped, tag = 'scoped memory for tpu_custom_call.1']
    #allocation4 [shape = 's32[1]{0}', space=sflag, size = 0x4, scoped, tag = 'scoped memory for tpu_custom_call.1']
    #allocation5 [shape = 'u8[4096]{0}', space=vmem, size = 0x1000, scoped, tag = 'output window, operand 0, single buffered']
    #allocation6 [shape = 'u8[4096]{0}', space=vmem, size = 0x1000, scoped, tag = 'output window, operand 1, single buffered']
    #allocation7 [shape = 's32[1]{0}', space=sflag, size = 0x4, scoped, tag = 'scoped memory for tpu_custom_call.1']
    %10 = vsyncpa [#allocation3], 0
    %11 = vsyncpa [#allocation4], 0
    %12 = vsyncpa [#allocation7], 0
    // Predicated region
    $region2: #{tpu_custom_call.1} parent=1 // pred_check
      _
    $region3: #{tpu_custom_call.1} parent=1 // pred_check_branch
      %14 = sbr.rel (0) target = $region5
    $region4: #{tpu_custom_call.1} parent=1 // pred_region
      _
    $region5: #{tpu_custom_call.1} parent=1 // pred_fallthru
      _
    // Predicated region
    $region6: #{tpu_custom_call.1} parent=1 // pred_check
      _
    $region7: #{tpu_custom_call.1} parent=1 // pred_check_branch
      %16 = sbr.rel (0) target = $region9
    $region8: #{tpu_custom_call.1} parent=1 // pred_region
      %s18 = ssub.s32 1536, 1536
      %19 = vsyncadd [#allocation3], %s18
      %s20 = sshll.u32 [#allocation2], 4
      %s21 = int_to_ptr.vmem [resolvable:$true] %s20
      %26 = dma.hbm_to_vmem [thread:$0]  %s1, 1536, %s21, [#allocation3], 192, 192, 12
    $region9: #{tpu_custom_call.1} parent=1 // pred_fallthru
      _
    // Predicated region
    $region10: #{tpu_custom_call.1} parent=1 // pred_check
      _
    $region11: #{tpu_custom_call.1} parent=1 // pred_check_branch
      %28 = sbr.rel (0) target = $region13
    $region12: #{tpu_custom_call.1} parent=1 // pred_region
      _
    $region13: #{tpu_custom_call.1} parent=1 // pred_fallthru
      _
    // Predicated region
    $region14: #{tpu_custom_call.1} parent=1 // pred_check
      _
    $region15: #{tpu_custom_call.1} parent=1 // pred_check_branch
      %30 = sbr.rel (0) target = $region17
    $region16: #{tpu_custom_call.1} parent=1 // pred_region
      %31 = dma.done [#allocation3], 1536
    $region17: #{tpu_custom_call.1} parent=1 // pred_fallthru
      _
    %v33 = vld [vmem:[%s0] sm:$0xf]
    %v34 = vld [vmem:[%s0 + $0x4] sm:$0xf]
    %v35 = vld [vmem:[%s0 + $0x8] sm:$0xf]
    %v36 = vld [vmem:[%s0 + $0xc] sm:$0xf]
    %v37 = vld [vmem:[%s0 + $0x10] sm:$0xf]
    %v38 = vld [vmem:[%s0 + $0x14] sm:$0xf]
    %v39 = vld [vmem:[%s0 + $0x18] sm:$0xf]
    %v40 = vld [vmem:[%s0 + $0x1c] sm:$0xf]
    %v41 = vld [vmem:[%s0 + $0x20] sm:$0xf]
    %v42 = vld [vmem:[%s0 + $0x24] sm:$0xf]
    %v43 = vld [vmem:[%s0 + $0x28] sm:$0xf]
    %v44 = vld [vmem:[%s0 + $0x2c] sm:$0xf]
    %v45 = vld [vmem:[%s0 + $0x30] sm:$0xf]
    %v46 = vld [vmem:[%s0 + $0x34] sm:$0xf]
    %v47 = vld [vmem:[%s0 + $0x38] sm:$0xf]
    %v48 = vld [vmem:[%s0 + $0x3c] sm:$0xf]
    %v49 = vld [vmem:[#allocation2] sm:$0xf]
    %v50 = vld [vmem:[#allocation2 + $0xc] sm:$0xf]
    %v51 = vld [vmem:[#allocation2 + $0x18] sm:$0xf]
    %v52 = vld [vmem:[#allocation2 + $0x24] sm:$0xf]
    %v53 = vld [vmem:[#allocation2 + $0x30] sm:$0xf]
    %v54 = vld [vmem:[#allocation2 + $0x3c] sm:$0xf]
    %v55 = vld [vmem:[%s2 + $0x18] ss:$0 sm:$0xff]
    %v72 = vunpack.c.l.b16 %v33
    %v73 = vunpack.c.l.b16 %v34
    %v74 = vunpack.c.l.b16 %v35
    %v75 = vunpack.c.l.b16 %v36
    %v76 = vunpack.c.l.b16 %v37
    %v77 = vunpack.c.l.b16 %v38
    %v78 = vunpack.c.l.b16 %v39
    %v79 = vunpack.c.l.b16 %v40
    %v80 = vunpack.c.l.b16 %v41
    %v81 = vunpack.c.l.b16 %v42
    %v82 = vunpack.c.l.b16 %v43
    %v83 = vunpack.c.l.b16 %v44
    %v84 = vunpack.c.l.b16 %v45
    %v85 = vunpack.c.l.b16 %v46
    %v86 = vunpack.c.l.b16 %v47
    %v87 = vunpack.c.l.b16 %v48
    %v88 = vpack.c.b16 %v73, %v72
    %v89 = vpack.c.b16 %v75, %v74
    %v90 = vpack.c.b16 %v77, %v76
    %v91 = vpack.c.b16 %v79, %v78
    %v92 = vpack.c.b16 %v81, %v80
    %v93 = vpack.c.b16 %v83, %v82
    %v94 = vpack.c.b16 %v85, %v84
    %v95 = vpack.c.b16 %v87, %v86
    %v102 = vunpack.c.l.b16 %v49
    %v103 = vunpack.c.l.b16 %v50
    %v104 = vunpack.c.l.b16 %v51
    %v105 = vunpack.c.l.b16 %v52
    %v106 = vunpack.c.l.b16 %v53
    %v107 = vunpack.c.l.b16 %v54
    %v108 = vpack.c.b16 %v103, %v102
    %v109 = vpack.c.b16 %v105, %v104
    %v110 = vpack.c.b16 %v107, %v106
    %vm114 = vcmask 392192
    %v116 = vsel %vm114, %v88, 0
    %v119 = vsel %vm114, %v89, 0
    %v122 = vsel %vm114, %v90, 0
    %v125 = vsel %vm114, %v91, 0
    %v128 = vsel %vm114, %v92, 0
    %v131 = vsel %vm114, %v93, 0
    %v134 = vsel %vm114, %v94, 0
    %v137 = vsel %vm114, %v95, 0
    %139 = vmatprep.subr.bf16.mxu0 0
    %140 = vmatpush1.bf16.msra.mxu0 %v108
    %141 = vmatprep.subr.bf16.mxu0 0
    %142 = vmatpush1.bf16.msra.mxu0 %v109
    %143 = vmatprep.subr.bf16.mxu0 0
    %144 = vmatpush1.bf16.msra.mxu0 %v110
    %145 = vmatprep.subr.bf16.mxu0 0
    %146 = vmatpush1.bf16.msra.mxu0 0
    %147 = vmatprep.subr.bf16.mxu0 0
    %148 = vmatpush1.bf16.msra.mxu0 0
    %149 = vmatprep.subr.bf16.mxu0 0
    %150 = vmatpush1.bf16.msra.mxu0 0
    %151 = vmatprep.subr.bf16.mxu0 0
    %152 = vmatpush1.bf16.msra.mxu0 0
    %153 = vmatprep.subr.bf16.mxu0 0
    %154 = vmatpush1.bf16.msra.mxu0 0
    %155 = vmatprep.subr.bf16.mxu0 0
    %156 = vmatpush1.bf16.msra.mxu0 0
    %157 = vmatprep.subr.bf16.mxu0 0
    %158 = vmatpush1.bf16.msra.mxu0 0
    %159 = vmatprep.subr.bf16.mxu0 0
    %160 = vmatpush1.bf16.msra.mxu0 0
    %161 = vmatprep.subr.bf16.mxu0 0
    %162 = vmatpush1.bf16.msra.mxu0 0
    %163 = vmatprep.subr.bf16.mxu0 0
    %164 = vmatpush1.bf16.msra.mxu0 0
    %165 = vmatprep.subr.bf16.mxu0 0
    %166 = vmatpush1.bf16.msra.mxu0 0
    %167 = vmatprep.subr.bf16.mxu0 0
    %168 = vmatpush1.bf16.msra.mxu0 0
    %169 = vmatprep.subr.bf16.mxu0 0
    %170 = vmatpush1.bf16.msra.mxu0 0
    %171 = vmatprep.mubr.bf16.mxu0 0
    %172 = vmatmul.mubr.bf16.gmra.mrb[0].mxu0 %v116
    %v173 = vpop.f32.mrb[0].mxu0
    %v174 = vadd.f32 %v55, %v173
    %v175 = vpop.f32.mrb[0].mxu0
    %v176 = vpop.f32.mrb[0].mxu0
    %v177 = vadd.f32 %v55, %v176
    %v178 = vpop.f32.mrb[0].mxu0
    %179 = vmatprep.mubr.bf16.mxu0 0
    %180 = vmatmul.mubr.bf16.gmra.mrb[0].mxu0 %v119
    %v181 = vpop.f32.mrb[0].mxu0
    %v182 = vadd.f32 %v55, %v181
    %v183 = vpop.f32.mrb[0].mxu0
    %v184 = vpop.f32.mrb[0].mxu0
    %v185 = vadd.f32 %v55, %v184
    %v186 = vpop.f32.mrb[0].mxu0
    %187 = vmatprep.mubr.bf16.mxu0 0
    %188 = vmatmul.mubr.bf16.gmra.mrb[0].mxu0 %v122
    %v189 = vpop.f32.mrb[0].mxu0
    %v190 = vadd.f32 %v55, %v189
    %v191 = vpop.f32.mrb[0].mxu0
    %v192 = vpop.f32.mrb[0].mxu0
    %v193 = vadd.f32 %v55, %v192
    %v194 = vpop.f32.mrb[0].mxu0
    %195 = vmatprep.mubr.bf16.mxu0 0
    %196 = vmatmul.mubr.bf16.gmra.mrb[0].mxu0 %v125
    %v197 = vpop.f32.mrb[0].mxu0
    %v198 = vadd.f32 %v55, %v197
    %v199 = vpop.f32.mrb[0].mxu0
    %v200 = vpop.f32.mrb[0].mxu0
    %v201 = vadd.f32 %v55, %v200
    %v202 = vpop.f32.mrb[0].mxu0
    %203 = vmatprep.mubr.bf16.mxu0 0
    %204 = vmatmul.mubr.bf16.gmra.mrb[0].mxu0 %v128
    %v205 = vpop.f32.mrb[0].mxu0
    %v206 = vadd.f32 %v55, %v205
    %v207 = vpop.f32.mrb[0].mxu0
    %v208 = vpop.f32.mrb[0].mxu0
    %v209 = vadd.f32 %v55, %v208
    %v210 = vpop.f32.mrb[0].mxu0
    %211 = vmatprep.mubr.bf16.mxu0 0
    %212 = vmatmul.mubr.bf16.gmra.mrb[0].mxu0 %v131
    %v213 = vpop.f32.mrb[0].mxu0
    %v214 = vadd.f32 %v55, %v213
    %v215 = vpop.f32.mrb[0].mxu0
    %v216 = vpop.f32.mrb[0].mxu0
    %v217 = vadd.f32 %v55, %v216
    %v218 = vpop.f32.mrb[0].mxu0
    %219 = vmatprep.mubr.bf16.mxu0 0
    %220 = vmatmul.mubr.bf16.gmra.mrb[0].mxu0 %v134
    %v221 = vpop.f32.mrb[0].mxu0
    %v222 = vadd.f32 %v55, %v221
    %v223 = vpop.f32.mrb[0].mxu0
    %v224 = vpop.f32.mrb[0].mxu0
    %v225 = vadd.f32 %v55, %v224
    %v226 = vpop.f32.mrb[0].mxu0
    %227 = vmatprep.mubr.bf16.mxu0 0
    %228 = vmatmul.mubr.bf16.gmra.mrb[0].mxu0 %v137
    %v229 = vpop.f32.mrb[0].mxu0
    %v230 = vadd.f32 %v55, %v229
    %v231 = vpop.f32.mrb[0].mxu0
    %v232 = vpop.f32.mrb[0].mxu0
    %v233 = vadd.f32 %v55, %v232
    %v234 = vpop.f32.mrb[0].mxu0
    %235 = vdwg.mxu0
    %v236 = vmax.f32 %v174, 0.0
    %v237 = vmax.f32 %v177, 0.0
    %v238 = vmax.f32 %v182, 0.0
    %v239 = vmax.f32 %v185, 0.0
    %v240 = vmax.f32 %v190, 0.0
    %v241 = vmax.f32 %v193, 0.0
    %v242 = vmax.f32 %v198, 0.0
    %v243 = vmax.f32 %v201, 0.0
    %v244 = vmax.f32 %v206, 0.0
    %v245 = vmax.f32 %v209, 0.0
    %v246 = vmax.f32 %v214, 0.0
    %v247 = vmax.f32 %v217, 0.0
    %v248 = vmax.f32 %v222, 0.0
    %v249 = vmax.f32 %v225, 0.0
    %v250 = vmax.f32 %v230, 0.0
    %v251 = vmax.f32 %v233, 0.0
    %v252 = vpack.c.bf16 %v237, %v236
    %v253 = vpack.c.bf16 %v239, %v238
    %v254 = vpack.c.bf16 %v241, %v240
    %v255 = vpack.c.bf16 %v243, %v242
    %v256 = vpack.c.bf16 %v245, %v244
    %v257 = vpack.c.bf16 %v247, %v246
    %v258 = vpack.c.bf16 %v249, %v248
    %v259 = vpack.c.bf16 %v251, %v250
    %v260 = vld [vmem:[#allocation2] sm:$0xf]
    %v261 = vld [vmem:[#allocation2 + $0xc] sm:$0xf]
    %v262 = vld [vmem:[#allocation2 + $0x18] sm:$0xf]
    %v263 = vld [vmem:[#allocation2 + $0x24] sm:$0xf]
    %v268 = vunpack.c.l.b16 %v260
    %v269 = vunpack.c.l.b16 %v261
    %v270 = vunpack.c.l.b16 %v262
    %v271 = vunpack.c.l.b16 %v263
    %v272 = vpack.c.b16 %v269, %v268
    %v273 = vpack.c.b16 %v271, %v270
    %274 = vrot.lane.b32.xlu0 %v272, 96
    %v275 = vpop.permute.xlu0 %274
    %276 = vrot.lane.b32.xlu0 %v273, 96
    %v277 = vpop.permute.xlu0 %276
    %281 = vrot.lane.b32.xlu0 %v55, 96
    %v282 = vpop.permute.xlu0 %281
    %vm284 = vcmask 261120
    %v286 = vsel %vm284, %v252, 0
    %v289 = vsel %vm284, %v253, 0
    %v292 = vsel %vm284, %v254, 0
    %v295 = vsel %vm284, %v255, 0
    %v298 = vsel %vm284, %v256, 0
    %v301 = vsel %vm284, %v257, 0
    %v304 = vsel %vm284, %v258, 0
    %v307 = vsel %vm284, %v259, 0
    %309 = vmatprep.subr.bf16.mxu0 0
    %310 = vmatpush1.bf16.msra.mxu0 %v275
    %311 = vmatprep.subr.bf16.mxu0 0
    %312 = vmatpush1.bf16.msra.mxu0 %v277
    %313 = vmatprep.subr.bf16.mxu0 0
    %314 = vmatpush1.bf16.msra.mxu0 0
    %315 = vmatprep.subr.bf16.mxu0 0
    %316 = vmatpush1.bf16.msra.mxu0 0
    %317 = vmatprep.subr.bf16.mxu0 0
    %318 = vmatpush1.bf16.msra.mxu0 0
    %319 = vmatprep.subr.bf16.mxu0 0
    %320 = vmatpush1.bf16.msra.mxu0 0
    %321 = vmatprep.subr.bf16.mxu0 0
    %322 = vmatpush1.bf16.msra.mxu0 0
    %323 = vmatprep.subr.bf16.mxu0 0
    %324 = vmatpush1.bf16.msra.mxu0 0
    %325 = vmatprep.subr.bf16.mxu0 0
    %326 = vmatpush1.bf16.msra.mxu0 0
    %327 = vmatprep.subr.bf16.mxu0 0
    %328 = vmatpush1.bf16.msra.mxu0 0
    %329 = vmatprep.subr.bf16.mxu0 0
    %330 = vmatpush1.bf16.msra.mxu0 0
    %331 = vmatprep.subr.bf16.mxu0 0
    %332 = vmatpush1.bf16.msra.mxu0 0
    %333 = vmatprep.subr.bf16.mxu0 0
    %334 = vmatpush1.bf16.msra.mxu0 0
    %335 = vmatprep.subr.bf16.mxu0 0
    %336 = vmatpush1.bf16.msra.mxu0 0
    %337 = vmatprep.subr.bf16.mxu0 0
    %338 = vmatpush1.bf16.msra.mxu0 0
    %339 = vmatprep.subr.bf16.mxu0 0
    %340 = vmatpush1.bf16.msra.mxu0 0
    %341 = vmatprep.mubr.bf16.mxu0 0
    %342 = vmatmul.mubr.bf16.gmra.mrb[0].mxu0 %v286
    %v343 = vpop.f32.mrb[0].mxu0
    %v344 = vadd.f32 %v282, %v343
    %v345 = vpop.f32.mrb[0].mxu0
    %v346 = vpop.f32.mrb[0].mxu0
    %v347 = vadd.f32 %v282, %v346
    %v348 = vpop.f32.mrb[0].mxu0
    %349 = vmatprep.mubr.bf16.mxu0 0
    %350 = vmatmul.mubr.bf16.gmra.mrb[0].mxu0 %v289
    %v351 = vpop.f32.mrb[0].mxu0
    %v352 = vadd.f32 %v282, %v351
    %v353 = vpop.f32.mrb[0].mxu0
    %v354 = vpop.f32.mrb[0].mxu0
    %v355 = vadd.f32 %v282, %v354
    %v356 = vpop.f32.mrb[0].mxu0
    %357 = vmatprep.mubr.bf16.mxu0 0
    %358 = vmatmul.mubr.bf16.gmra.mrb[0].mxu0 %v292
    %v359 = vpop.f32.mrb[0].mxu0
    %v360 = vadd.f32 %v282, %v359
    %v361 = vpop.f32.mrb[0].mxu0
    %v362 = vpop.f32.mrb[0].mxu0
    %v363 = vadd.f32 %v282, %v362
    %v364 = vpop.f32.mrb[0].mxu0
    %365 = vmatprep.mubr.bf16.mxu0 0
    %366 = vmatmul.mubr.bf16.gmra.mrb[0].mxu0 %v295
    %v367 = vpop.f32.mrb[0].mxu0
    %v368 = vadd.f32 %v282, %v367
    %v369 = vpop.f32.mrb[0].mxu0
    %v370 = vpop.f32.mrb[0].mxu0
    %v371 = vadd.f32 %v282, %v370
    %v372 = vpop.f32.mrb[0].mxu0
    %373 = vmatprep.mubr.bf16.mxu0 0
    %374 = vmatmul.mubr.bf16.gmra.mrb[0].mxu0 %v298
    %v375 = vpop.f32.mrb[0].mxu0
    %v376 = vadd.f32 %v282, %v375
    %v377 = vpop.f32.mrb[0].mxu0
    %v378 = vpop.f32.mrb[0].mxu0
    %v379 = vadd.f32 %v282, %v378
    %v380 = vpop.f32.mrb[0].mxu0
    %381 = vmatprep.mubr.bf16.mxu0 0
    %382 = vmatmul.mubr.bf16.gmra.mrb[0].mxu0 %v301
    %v383 = vpop.f32.mrb[0].mxu0
    %v384 = vadd.f32 %v282, %v383
    %v385 = vpop.f32.mrb[0].mxu0
    %v386 = vpop.f32.mrb[0].mxu0
    %v387 = vadd.f32 %v282, %v386
    %v388 = vpop.f32.mrb[0].mxu0
    %389 = vmatprep.mubr.bf16.mxu0 0
    %390 = vmatmul.mubr.bf16.gmra.mrb[0].mxu0 %v304
    %v391 = vpop.f32.mrb[0].mxu0
    %v392 = vadd.f32 %v282, %v391
    %v393 = vpop.f32.mrb[0].mxu0
    %v394 = vpop.f32.mrb[0].mxu0
    %v395 = vadd.f32 %v282, %v394
    %v396 = vpop.f32.mrb[0].mxu0
    %397 = vmatprep.mubr.bf16.mxu0 0
    %398 = vmatmul.mubr.bf16.gmra.mrb[0].mxu0 %v307
    %v399 = vpop.f32.mrb[0].mxu0
    %v400 = vadd.f32 %v282, %v399
    %v401 = vpop.f32.mrb[0].mxu0
    %v402 = vpop.f32.mrb[0].mxu0
    %v403 = vadd.f32 %v282, %v402
    %v404 = vpop.f32.mrb[0].mxu0
    %405 = vdwg.mxu0
    %v406 = vpack.c.bf16 %v347, %v344
    %v407 = vpack.c.bf16 %v355, %v352
    %v408 = vpack.c.bf16 %v363, %v360
    %v409 = vpack.c.bf16 %v371, %v368
    %v410 = vpack.c.bf16 %v379, %v376
    %v411 = vpack.c.bf16 %v387, %v384
    %v412 = vpack.c.bf16 %v395, %v392
    %v413 = vpack.c.bf16 %v403, %v400
    %v414 = vld [vmem:[%s2] sm:$0xff]
    %v415 = vpack.c.bf16 %v414, %v414
    %424 = vrot.lane.b32.xlu0 %v406, 96
    %v425 = vpop.permute.xlu0 %424
    %426 = vrot.lane.b32.xlu0 %v407, 96
    %v427 = vpop.permute.xlu0 %426
    %428 = vrot.lane.b32.xlu0 %v408, 96
    %v429 = vpop.permute.xlu0 %428
    %430 = vrot.lane.b32.xlu0 %v409, 96
    %v431 = vpop.permute.xlu0 %430
    %432 = vrot.lane.b32.xlu0 %v410, 96
    %v433 = vpop.permute.xlu0 %432
    %434 = vrot.lane.b32.xlu0 %v411, 96
    %v435 = vpop.permute.xlu0 %434
    %436 = vrot.lane.b32.xlu0 %v412, 96
    %v437 = vpop.permute.xlu0 %436
    %438 = vrot.lane.b32.xlu0 %v413, 96
    %v439 = vpop.permute.xlu0 %438
    %v441 = vsel %vm284, %v415, 0
    %v444 = vsel %vm284, %v425, 0
    %v447 = vsel %vm284, %v427, 0
    %v450 = vsel %vm284, %v429, 0
    %v453 = vsel %vm284, %v431, 0
    %v456 = vsel %vm284, %v433, 0
    %v459 = vsel %vm284, %v435, 0
    %v462 = vsel %vm284, %v437, 0
    %v465 = vsel %vm284, %v439, 0
    %467 = vmatprep.subr.bf16.mxu0 0
    %468 = vmatpush1.bf16.xpose.msra.mxu0 %v444
    %469 = vmatprep.subr.bf16.mxu0 0
    %470 = vmatpush1.bf16.xpose.msra.mxu0 %v447
    %471 = vmatprep.subr.bf16.mxu0 0
    %472 = vmatpush1.bf16.xpose.msra.mxu0 %v450
    %473 = vmatprep.subr.bf16.mxu0 0
    %474 = vmatpush1.bf16.xpose.msra.mxu0 %v453
    %475 = vmatprep.subr.bf16.mxu0 0
    %476 = vmatpush1.bf16.xpose.msra.mxu0 %v456
    %477 = vmatprep.subr.bf16.mxu0 0
    %478 = vmatpush1.bf16.xpose.msra.mxu0 %v459
    %479 = vmatprep.subr.bf16.mxu0 0
    %480 = vmatpush1.bf16.xpose.msra.mxu0 %v462
    %481 = vmatprep.subr.bf16.mxu0 0
    %482 = vmatpush1.bf16.xpose.msra.mxu0 %v465
    %483 = vmatprep.subr.bf16.mxu0 0
    %484 = vmatpush1.bf16.xpose.msra.mxu0 0
    %485 = vmatprep.subr.bf16.mxu0 0
    %486 = vmatpush1.bf16.xpose.msra.mxu0 0
    %487 = vmatprep.subr.bf16.mxu0 0
    %488 = vmatpush1.bf16.xpose.msra.mxu0 0
    %489 = vmatprep.subr.bf16.mxu0 0
    %490 = vmatpush1.bf16.xpose.msra.mxu0 0
    %491 = vmatprep.subr.bf16.mxu0 0
    %492 = vmatpush1.bf16.xpose.msra.mxu0 0
    %493 = vmatprep.subr.bf16.mxu0 0
    %494 = vmatpush1.bf16.xpose.msra.mxu0 0
    %495 = vmatprep.subr.bf16.mxu0 0
    %496 = vmatpush1.bf16.xpose.msra.mxu0 0
    %497 = vmatprep.subr.bf16.mxu0 0
    %498 = vmatpush1.bf16.xpose.msra.mxu0 0
    %499 = vmatprep.mubr.bf16.mxu0 0
    %500 = vmatmul.mubr.bf16.gmra.mrb[0].mxu0 %v441
    %v501 = vpop.f32.mrb[0].mxu0
    %v502 = vadd.f32 0.0, %v501
    %v503 = vpop.f32.mrb[0].mxu0
    %v504 = vpop.f32.mrb[0].mxu0
    %v505 = vpop.f32.mrb[0].mxu0
    %506 = vdwg.mxu0
    %vm507 = vcmask 523264
    %v508 = vsel %vm507, %v502, -inf
    %509 = vmax.xlane.f32.xlu0 %v508
    %v510 = vpop.xlane.xlu0 %509
    %v511 = vsub.f32 %v502, %v510
    %v512 = vmul.f32 %v511, 1.442695
    %v513 = vpow.pop %v512
    %v514 = vsel %vm507, %v513, 0.0
    %515 = vadd.xlane.f32.xlu0 %v514
    %v516 = vpop.xlane.xlu0 %515
    %v517 = vrcp.pop %v516
    %v518 = vmul.f32 %v513, %v517
    %vm519 = vcmask 1048064
    %v520 = vsel %vm519, %v502, -inf
    %521 = vmax.xlane.f32.xlu0 %v520
    %v522 = vpop.xlane.xlu0 %521
    %v523 = vsub.f32 %v502, %v522
    %v524 = vmul.f32 %v523, 1.442695
    %v525 = vpow.pop %v524
    %527 = vrot.lane.b32.xlu0 %v525, 64
    %v528 = vpop.permute.xlu0 %527
    %v530 = vsel %vm507, %v528, 0.0
    %531 = vadd.xlane.f32.xlu0 %v530
    %v532 = vpop.xlane.xlu0 %531
    %v533 = vrcp.pop %v532
    %v534 = vmul.f32 %v525, %v533
    %v535 = vsel %vm507, %v518, %v534
    %v536 = vpack.c.bf16 %v535, %v535
    %537 = vrot.lane.b32.xlu0 %v406, 64
    %v538 = vpop.permute.xlu0 %537
    %539 = vrot.lane.b32.xlu0 %v407, 64
    %v540 = vpop.permute.xlu0 %539
    %541 = vrot.lane.b32.xlu0 %v408, 64
    %v542 = vpop.permute.xlu0 %541
    %543 = vrot.lane.b32.xlu0 %v409, 64
    %v544 = vpop.permute.xlu0 %543
    %545 = vrot.lane.b32.xlu0 %v410, 64
    %v546 = vpop.permute.xlu0 %545
    %547 = vrot.lane.b32.xlu0 %v411, 64
    %v548 = vpop.permute.xlu0 %547
    %549 = vrot.lane.b32.xlu0 %v412, 64
    %v550 = vpop.permute.xlu0 %549
    %551 = vrot.lane.b32.xlu0 %v413, 64
    %v552 = vpop.permute.xlu0 %551
    %561 = vmatprep.subr.bf16.mxu0 0
    %562 = vmatpush1.bf16.msra.mxu0 %v538
    %563 = vmatprep.subr.bf16.mxu0 0
    %564 = vmatpush1.bf16.msra.mxu0 %v540
    %565 = vmatprep.subr.bf16.mxu0 0
    %566 = vmatpush1.bf16.msra.mxu0 %v542
    %567 = vmatprep.subr.bf16.mxu0 0
    %568 = vmatpush1.bf16.msra.mxu0 %v544
    %569 = vmatprep.subr.bf16.mxu0 0
    %570 = vmatpush1.bf16.msra.mxu0 %v546
    %571 = vmatprep.subr.bf16.mxu0 0
    %572 = vmatpush1.bf16.msra.mxu0 %v548
    %573 = vmatprep.subr.bf16.mxu0 0
    %574 = vmatpush1.bf16.msra.mxu0 %v550
    %575 = vmatprep.subr.bf16.mxu0 0
    %576 = vmatpush1.bf16.msra.mxu0 %v552
    %577 = vmatprep.subr.bf16.mxu0 0
    %578 = vmatpush1.bf16.msra.mxu0 0
    %579 = vmatprep.subr.bf16.mxu0 0
    %580 = vmatpush1.bf16.msra.mxu0 0
    %581 = vmatprep.subr.bf16.mxu0 0
    %582 = vmatpush1.bf16.msra.mxu0 0
    %583 = vmatprep.subr.bf16.mxu0 0
    %584 = vmatpush1.bf16.msra.mxu0 0
    %585 = vmatprep.subr.bf16.mxu0 0
    %586 = vmatpush1.bf16.msra.mxu0 0
    %587 = vmatprep.subr.bf16.mxu0 0
    %588 = vmatpush1.bf16.msra.mxu0 0
    %589 = vmatprep.subr.bf16.mxu0 0
    %590 = vmatpush1.bf16.msra.mxu0 0
    %591 = vmatprep.subr.bf16.mxu0 0
    %592 = vmatpush1.bf16.msra.mxu0 0
    %593 = vmatprep.mubr.bf16.mxu0 0
    %594 = vmatmul.mubr.bf16.gmra.mrb[0].mxu0 %v536
    %v595 = vpop.f32.mrb[0].mxu0
    %v596 = vadd.f32 0.0, %v595
    %v597 = vpop.f32.mrb[0].mxu0
    %v598 = vpop.f32.mrb[0].mxu0
    %v599 = vpop.f32.mrb[0].mxu0
    %600 = vdwg.mxu0
    %v601 = vpack.c.bf16 %v596, %v596
    %v602 = vld [vmem:[#allocation2 + $0x4] sm:$0xf]
    %v603 = vld [vmem:[#allocation2 + $0x10] sm:$0xf]
    %v604 = vld [vmem:[#allocation2 + $0x1c] sm:$0xf]
    %v605 = vld [vmem:[#allocation2 + $0x28] sm:$0xf]
    %v610 = vunpack.c.l.b16 %v602
    %v611 = vunpack.c.l.b16 %v603
    %v612 = vunpack.c.l.b16 %v604
    %v613 = vunpack.c.l.b16 %v605
    %v614 = vpack.c.b16 %v611, %v610
    %v615 = vpack.c.b16 %v613, %v612
    %619 = vrot.lane.b32.xlu0 %v414, 96
    %v620 = vpop.permute.xlu0 %619
    %v623 = vsel %vm284, %v601, 0
    %625 = vmatprep.subr.bf16.mxu0 0
    %626 = vmatpush1.bf16.msra.mxu0 %v614
    %627 = vmatprep.subr.bf16.mxu0 0
    %628 = vmatpush1.bf16.msra.mxu0 %v615
    %629 = vmatprep.subr.bf16.mxu0 0
    %630 = vmatpush1.bf16.msra.mxu0 0
    %631 = vmatprep.subr.bf16.mxu0 0
    %632 = vmatpush1.bf16.msra.mxu0 0
    %633 = vmatprep.subr.bf16.mxu0 0
    %634 = vmatpush1.bf16.msra.mxu0 0
    %635 = vmatprep.subr.bf16.mxu0 0
    %636 = vmatpush1.bf16.msra.mxu0 0
    %637 = vmatprep.subr.bf16.mxu0 0
    %638 = vmatpush1.bf16.msra.mxu0 0
    %639 = vmatprep.subr.bf16.mxu0 0
    %640 = vmatpush1.bf16.msra.mxu0 0
    %641 = vmatprep.subr.bf16.mxu0 0
    %642 = vmatpush1.bf16.msra.mxu0 0
    %643 = vmatprep.subr.bf16.mxu0 0
    %644 = vmatpush1.bf16.msra.mxu0 0
    %645 = vmatprep.subr.bf16.mxu0 0
    %646 = vmatpush1.bf16.msra.mxu0 0
    %647 = vmatprep.subr.bf16.mxu0 0
    %648 = vmatpush1.bf16.msra.mxu0 0
    %649 = vmatprep.subr.bf16.mxu0 0
    %650 = vmatpush1.bf16.msra.mxu0 0
    %651 = vmatprep.subr.bf16.mxu0 0
    %652 = vmatpush1.bf16.msra.mxu0 0
    %653 = vmatprep.subr.bf16.mxu0 0
    %654 = vmatpush1.bf16.msra.mxu0 0
    %655 = vmatprep.subr.bf16.mxu0 0
    %656 = vmatpush1.bf16.msra.mxu0 0
    %657 = vmatprep.mubr.bf16.mxu0 0
    %658 = vmatmul.mubr.bf16.gmra.mrb[0].mxu0 %v623
    %v659 = vpop.f32.mrb[0].mxu0
    %v660 = vadd.f32 %v620, %v659
    %v661 = vpop.f32.mrb[0].mxu0
    %v662 = vpop.f32.mrb[0].mxu0
    %v663 = vpop.f32.mrb[0].mxu0
    %664 = vdwg.mxu0
    %v665 = vpack.c.bf16 %v660, %v660
    %v666 = vld [vmem:[%s2 + $0x20] ss:$0 sm:$0xff]
    %667 = vrot.lane.b32.xlu0 %v614, 96
    %v668 = vpop.permute.xlu0 %667
    %669 = vrot.lane.b32.xlu0 %v615, 96
    %v670 = vpop.permute.xlu0 %669
    %674 = vrot.lane.b32.xlu0 %v666, 96
    %v675 = vpop.permute.xlu0 %674
    %v678 = vsel %vm284, %v665, 0
    %680 = vmatprep.subr.bf16.mxu0 0
    %681 = vmatpush1.bf16.msra.mxu0 %v668
    %682 = vmatprep.subr.bf16.mxu0 0
    %683 = vmatpush1.bf16.msra.mxu0 %v670
    %684 = vmatprep.subr.bf16.mxu0 0
    %685 = vmatpush1.bf16.msra.mxu0 0
    %686 = vmatprep.subr.bf16.mxu0 0
    %687 = vmatpush1.bf16.msra.mxu0 0
    %688 = vmatprep.subr.bf16.mxu0 0
    %689 = vmatpush1.bf16.msra.mxu0 0
    %690 = vmatprep.subr.bf16.mxu0 0
    %691 = vmatpush1.bf16.msra.mxu0 0
    %692 = vmatprep.subr.bf16.mxu0 0
    %693 = vmatpush1.bf16.msra.mxu0 0
    %694 = vmatprep.subr.bf16.mxu0 0
    %695 = vmatpush1.bf16.msra.mxu0 0
    %696 = vmatprep.subr.bf16.mxu0 0
    %697 = vmatpush1.bf16.msra.mxu0 0
    %698 = vmatprep.subr.bf16.mxu0 0
    %699 = vmatpush1.bf16.msra.mxu0 0
    %700 = vmatprep.subr.bf16.mxu0 0
    %701 = vmatpush1.bf16.msra.mxu0 0
    %702 = vmatprep.subr.bf16.mxu0 0
    %703 = vmatpush1.bf16.msra.mxu0 0
    %704 = vmatprep.subr.bf16.mxu0 0
    %705 = vmatpush1.bf16.msra.mxu0 0
    %706 = vmatprep.subr.bf16.mxu0 0
    %707 = vmatpush1.bf16.msra.mxu0 0
    %708 = vmatprep.subr.bf16.mxu0 0
    %709 = vmatpush1.bf16.msra.mxu0 0
    %710 = vmatprep.subr.bf16.mxu0 0
    %711 = vmatpush1.bf16.msra.mxu0 0
    %712 = vmatprep.mubr.bf16.mxu0 0
    %713 = vmatmul.mubr.bf16.gmra.mrb[0].mxu0 %v678
    %v714 = vpop.f32.mrb[0].mxu0
    %v715 = vadd.f32 %v675, %v714
    %v716 = vpop.f32.mrb[0].mxu0
    %v717 = vpop.f32.mrb[0].mxu0
    %v718 = vpop.f32.mrb[0].mxu0
    %719 = vdwg.mxu0
    %v720 = vmax.f32 %v715, 0.0
    %v721 = vpack.c.bf16 %v720, %v720
    %v722 = vld [vmem:[#allocation2 + $0x4] sm:$0xf]
    %v723 = vld [vmem:[#allocation2 + $0x10] sm:$0xf]
    %v724 = vld [vmem:[#allocation2 + $0x1c] sm:$0xf]
    %v725 = vld [vmem:[#allocation2 + $0x28] sm:$0xf]
    %v726 = vld [vmem:[#allocation2 + $0x34] sm:$0xf]
    %v727 = vld [vmem:[#allocation2 + $0x40] sm:$0xf]
    %v728 = vld [vmem:[#allocation2 + $0x4c] sm:$0xf]
    %v729 = vld [vmem:[#allocation2 + $0x58] sm:$0xf]
    %v738 = vunpack.c.l.b16 %v722
    %v739 = vunpack.c.l.b16 %v723
    %v740 = vunpack.c.l.b16 %v724
    %v741 = vunpack.c.l.b16 %v725
    %v742 = vunpack.c.l.b16 %v726
    %v743 = vunpack.c.l.b16 %v727
    %v744 = vunpack.c.l.b16 %v728
    %v745 = vunpack.c.l.b16 %v729
    %v746 = vpack.c.b16 %v739, %v738
    %v747 = vpack.c.b16 %v741, %v740
    %v748 = vpack.c.b16 %v743, %v742
    %v749 = vpack.c.b16 %v745, %v744
    %750 = vrot.lane.b32.xlu0 %v746, 32
    %v751 = vpop.permute.xlu0 %750
    %752 = vrot.lane.b32.xlu0 %v747, 32
    %v753 = vpop.permute.xlu0 %752
    %754 = vrot.lane.b32.xlu0 %v748, 32
    %v755 = vpop.permute.xlu0 %754
    %756 = vrot.lane.b32.xlu0 %v749, 32
    %v757 = vpop.permute.xlu0 %756
    %v763 = vsel %vm507, %v721, 0
    %765 = vmatprep.subr.bf16.mxu0 0
    %766 = vmatpush1.bf16.msra.mxu0 %v751
    %767 = vmatprep.subr.bf16.mxu0 0
    %768 = vmatpush1.bf16.msra.mxu0 %v753
    %769 = vmatprep.subr.bf16.mxu0 0
    %770 = vmatpush1.bf16.msra.mxu0 %v755
    %771 = vmatprep.subr.bf16.mxu0 0
    %772 = vmatpush1.bf16.msra.mxu0 %v757
    %773 = vmatprep.subr.bf16.mxu0 0
    %774 = vmatpush1.bf16.msra.mxu0 0
    %775 = vmatprep.subr.bf16.mxu0 0
    %776 = vmatpush1.bf16.msra.mxu0 0
    %777 = vmatprep.subr.bf16.mxu0 0
    %778 = vmatpush1.bf16.msra.mxu0 0
    %779 = vmatprep.subr.bf16.mxu0 0
    %780 = vmatpush1.bf16.msra.mxu0 0
    %781 = vmatprep.subr.bf16.mxu0 0
    %782 = vmatpush1.bf16.msra.mxu0 0
    %783 = vmatprep.subr.bf16.mxu0 0
    %784 = vmatpush1.bf16.msra.mxu0 0
    %785 = vmatprep.subr.bf16.mxu0 0
    %786 = vmatpush1.bf16.msra.mxu0 0
    %787 = vmatprep.subr.bf16.mxu0 0
    %788 = vmatpush1.bf16.msra.mxu0 0
    %789 = vmatprep.subr.bf16.mxu0 0
    %790 = vmatpush1.bf16.msra.mxu0 0
    %791 = vmatprep.subr.bf16.mxu0 0
    %792 = vmatpush1.bf16.msra.mxu0 0
    %793 = vmatprep.subr.bf16.mxu0 0
    %794 = vmatpush1.bf16.msra.mxu0 0
    %795 = vmatprep.subr.bf16.mxu0 0
    %796 = vmatpush1.bf16.msra.mxu0 0
    %797 = vmatprep.mubr.bf16.mxu0 0
    %798 = vmatmul.mubr.bf16.gmra.mrb[0].mxu0 %v763
    %v799 = vpop.f32.mrb[0].mxu0
    %v800 = vadd.f32 0.0, %v799
    %v801 = vpop.f32.mrb[0].mxu0
    %v802 = vpop.f32.mrb[0].mxu0
    %v803 = vpop.f32.mrb[0].mxu0
    %804 = vdwg.mxu0
    %v805 = vadd.f32 %v660, %v800
    %806 = vrot.lane.b32.xlu0 %v666, 32
    %v807 = vpop.permute.xlu0 %806
    %v809 = vadd.f32 %v805, %v807
    %v810 = vpack.c.bf16 %v809, %v809
    %v811 = vld [vmem:[#allocation2 + $0x8] sm:$0xf]
    %v812 = vld [vmem:[#allocation2 + $0x14] sm:$0xf]
    %v813 = vld [vmem:[#allocation2 + $0x20] sm:$0xf]
    %v814 = vld [vmem:[#allocation2 + $0x2c] sm:$0xf]
    %v815 = vld [vmem:[%s2 + $0x28] ss:$0 sm:$0xff]
    %v820 = vunpack.c.l.b16 %v811
    %v821 = vunpack.c.l.b16 %v812
    %v822 = vunpack.c.l.b16 %v813
    %v823 = vunpack.c.l.b16 %v814
    %v824 = vpack.c.b16 %v821, %v820
    %v825 = vpack.c.b16 %v823, %v822
    %v829 = vsel %vm284, %v810, 0
    %831 = vmatprep.subr.bf16.mxu0 0
    %832 = vmatpush1.bf16.msra.mxu0 %v824
    %833 = vmatprep.subr.bf16.mxu0 0
    %834 = vmatpush1.bf16.msra.mxu0 %v825
    %835 = vmatprep.subr.bf16.mxu0 0
    %836 = vmatpush1.bf16.msra.mxu0 0
    %837 = vmatprep.subr.bf16.mxu0 0
    %838 = vmatpush1.bf16.msra.mxu0 0
    %839 = vmatprep.subr.bf16.mxu0 0
    %840 = vmatpush1.bf16.msra.mxu0 0
    %841 = vmatprep.subr.bf16.mxu0 0
    %842 = vmatpush1.bf16.msra.mxu0 0
    %843 = vmatprep.subr.bf16.mxu0 0
    %844 = vmatpush1.bf16.msra.mxu0 0
    %845 = vmatprep.subr.bf16.mxu0 0
    %846 = vmatpush1.bf16.msra.mxu0 0
    %847 = vmatprep.subr.bf16.mxu0 0
    %848 = vmatpush1.bf16.msra.mxu0 0
    %849 = vmatprep.subr.bf16.mxu0 0
    %850 = vmatpush1.bf16.msra.mxu0 0
    %851 = vmatprep.subr.bf16.mxu0 0
    %852 = vmatpush1.bf16.msra.mxu0 0
    %853 = vmatprep.subr.bf16.mxu0 0
    %854 = vmatpush1.bf16.msra.mxu0 0
    %855 = vmatprep.subr.bf16.mxu0 0
    %856 = vmatpush1.bf16.msra.mxu0 0
    %857 = vmatprep.subr.bf16.mxu0 0
    %858 = vmatpush1.bf16.msra.mxu0 0
    %859 = vmatprep.subr.bf16.mxu0 0
    %860 = vmatpush1.bf16.msra.mxu0 0
    %861 = vmatprep.subr.bf16.mxu0 0
    %862 = vmatpush1.bf16.msra.mxu0 0
    %863 = vmatprep.mubr.bf16.mxu0 0
    %864 = vmatmul.mubr.bf16.gmra.mrb[0].mxu0 %v829
    %v865 = vpop.f32.mrb[0].mxu0
    %v866 = vadd.f32 %v815, %v865
    %v867 = vpop.f32.mrb[0].mxu0
    %v868 = vpop.f32.mrb[0].mxu0
    %v869 = vpop.f32.mrb[0].mxu0
    %870 = vdwg.mxu0
    %vm871 = vcmask 302336
    %v872 = vsel %vm871, %v866, -inf
    %873 = vmax.xlane.f32.xlu0 %v872
    %v874 = vpop.xlane.xlu0 %873
    %v875 = vsub.f32 %v866, %v874
    %v876 = vmul.f32 %v875, 1.442695
    %v877 = vpow.pop %v876
    %879 = vrot.lane.b32.xlu0 %v877, 96
    %v880 = vpop.permute.xlu0 %879
    %vm882 = vcmask 39936
    %v883 = vsel %vm882, %v880, 0.0
    %884 = vadd.xlane.f32.xlu0 %v883
    %v885 = vpop.xlane.xlu0 %884
    %v886 = vrcp.pop %v885
    %v887 = vmul.f32 %v877, %v886
    %889 = vrot.lane.b32.xlu0 %v887, 96
    %v890 = vpop.permute.xlu0 %889
    %v892 = vsel %vm882, %v890, 0.0
    %893 = vst [vmem:[#allocation6] sm:$0xff] %v892
    %v894 = vpack.c.bf16 %v866, %v866
    %v896 = vsel %vm284, %v894, 0
    %v899 = vsel %vm284, %v406, 0
    %v902 = vsel %vm284, %v407, 0
    %v905 = vsel %vm284, %v408, 0
    %v908 = vsel %vm284, %v409, 0
    %v911 = vsel %vm284, %v410, 0
    %v914 = vsel %vm284, %v411, 0
    %v917 = vsel %vm284, %v412, 0
    %v920 = vsel %vm284, %v413, 0
    %922 = vmatprep.subr.bf16.mxu0 0
    %923 = vmatpush1.bf16.xpose.msra.mxu0 %v899
    %924 = vmatprep.subr.bf16.mxu0 0
    %925 = vmatpush1.bf16.xpose.msra.mxu0 %v902
    %926 = vmatprep.subr.bf16.mxu0 0
    %927 = vmatpush1.bf16.xpose.msra.mxu0 %v905
    %928 = vmatprep.subr.bf16.mxu0 0
    %929 = vmatpush1.bf16.xpose.msra.mxu0 %v908
    %930 = vmatprep.subr.bf16.mxu0 0
    %931 = vmatpush1.bf16.xpose.msra.mxu0 %v911
    %932 = vmatprep.subr.bf16.mxu0 0
    %933 = vmatpush1.bf16.xpose.msra.mxu0 %v914
    %934 = vmatprep.subr.bf16.mxu0 0
    %935 = vmatpush1.bf16.xpose.msra.mxu0 %v917
    %936 = vmatprep.subr.bf16.mxu0 0
    %937 = vmatpush1.bf16.xpose.msra.mxu0 %v920
    %938 = vmatprep.subr.bf16.mxu0 0
    %939 = vmatpush1.bf16.xpose.msra.mxu0 0
    %940 = vmatprep.subr.bf16.mxu0 0
    %941 = vmatpush1.bf16.xpose.msra.mxu0 0
    %942 = vmatprep.subr.bf16.mxu0 0
    %943 = vmatpush1.bf16.xpose.msra.mxu0 0
    %944 = vmatprep.subr.bf16.mxu0 0
    %945 = vmatpush1.bf16.xpose.msra.mxu0 0
    %946 = vmatprep.subr.bf16.mxu0 0
    %947 = vmatpush1.bf16.xpose.msra.mxu0 0
    %948 = vmatprep.subr.bf16.mxu0 0
    %949 = vmatpush1.bf16.xpose.msra.mxu0 0
    %950 = vmatprep.subr.bf16.mxu0 0
    %951 = vmatpush1.bf16.xpose.msra.mxu0 0
    %952 = vmatprep.subr.bf16.mxu0 0
    %953 = vmatpush1.bf16.xpose.msra.mxu0 0
    %954 = vmatprep.mubr.bf16.mxu0 0
    %955 = vmatmul.mubr.bf16.gmra.mrb[0].mxu0 %v896
    %v956 = vpop.f32.mrb[0].mxu0
    %v957 = vadd.f32 0.0, %v956
    %v958 = vpop.f32.mrb[0].mxu0
    %v959 = vpop.f32.mrb[0].mxu0
    %v960 = vpop.f32.mrb[0].mxu0
    %961 = vdwg.mxu0
    %962 = vst [vmem:[#allocation5] sm:$0xff] %v957
    // Predicated region
    $region18: #{tpu_custom_call.1} parent=1 // pred_check
      _
    $region19: #{tpu_custom_call.1} parent=1 // pred_check_branch
      %964 = sbr.rel (0) target = $region21
    $region20: #{tpu_custom_call.1} parent=1 // pred_region
      %s966 = ssub.s32 128, 128
      %967 = vsyncadd [#allocation4], %s966
      %s969 = sshll.u32 [#allocation5], 4
      %s970 = int_to_ptr.vmem [resolvable:$true] %s969
      %972 = dma.vmem_to_hbm [thread:$0]  %s970, 128, %s3, [#allocation4]
    $region21: #{tpu_custom_call.1} parent=1 // pred_fallthru
      _
    // Predicated region
    $region22: #{tpu_custom_call.1} parent=1 // pred_check
      _
    $region23: #{tpu_custom_call.1} parent=1 // pred_check_branch
      %974 = sbr.rel (0) target = $region25
    $region24: #{tpu_custom_call.1} parent=1 // pred_region
      %s976 = ssub.s32 128, 128
      %977 = vsyncadd [#allocation7], %s976
      %s979 = sshll.u32 [#allocation6], 4
      %s980 = int_to_ptr.vmem [resolvable:$true] %s979
      %982 = dma.vmem_to_hbm [thread:$0]  %s980, 128, %s4, [#allocation7]
    $region25: #{tpu_custom_call.1} parent=1 // pred_fallthru
      _
    // Predicated region
    $region26: #{tpu_custom_call.1} parent=1 // pred_check
      _
    $region27: #{tpu_custom_call.1} parent=1 // pred_check_branch
      %984 = sbr.rel (0) target = $region29
    $region28: #{tpu_custom_call.1} parent=1 // pred_region
      %985 = dma.done [#allocation4], 128
    $region29: #{tpu_custom_call.1} parent=1 // pred_fallthru
      _
    // Predicated region
    $region30: #{tpu_custom_call.1} parent=1 // pred_check
      _
    $region31: #{tpu_custom_call.1} parent=1 // pred_check_branch
      %987 = sbr.rel (0) target = $region33
    $region32: #{tpu_custom_call.1} parent=1 // pred_region
      %988 = dma.done [#allocation7], 128
    $region33: #{tpu_custom_call.1} parent=1 // pred_fallthru
      _
    %989 = vsyncpa [#allocation3], 1
    %990 = vsyncpa [#allocation4], 1
    %991 = vsyncpa [#allocation7], 1

</llo_original>
